<compile_context>
chip_gen: v7x
topology: tpu7x:2x2x1
jax: 0.10.0
libtpu: 0.0.40
codegen_flags: <defaults>
</compile_context>

<pallas_src>
import jax
import jax.numpy as jnp
from jax.experimental import pallas as pl
from jax.experimental.pallas import tpu as pltpu


def _round_up(x, m):
    return ((x + m - 1) // m) * m


def _pick_row_tile(M):
    """Row tile: sublane-aligned, as large as VMEM comfortably allows (the
    kernel is HBM-bound, bigger tiles amortize per-step overhead and approach
    the HBM roofline), while keeping >= 2 grid tiles for large batches so
    v7x's two TensorCores both get work on the "parallel" row axis."""
    if M >= 16:
        tm = _round_up(pl.cdiv(M, 2), 8)   # at least 2 tiles
    else:
        tm = _round_up(max(M, 1), 8)       # tiny batch: one padded tile
    return min(512, tm)


def _siamese_mlp_kernel(x1_ref, x2_ref, w1_ref, b1_ref, w2_ref, b2_ref,
                        o1_ref, o2_ref):
    """Fused 2-layer MLP applied to one row tile of EACH siamese branch with
    shared (VMEM-resident) weights:  o = relu(x @ W1 + b1) @ W2 + b2.

    Matmuls run on the MXU in bf16 with f32 accumulation; bias adds and ReLU
    run on the VPU in f32 before the bf16 cast of the hidden activations.
    """
    w1 = w1_ref[...]                                   # bf16, resident
    b1 = b1_ref[...]                                   # f32
    w2 = w2_ref[...]                                   # bf16, resident
    b2 = b2_ref[...]                                   # f32

    def branch(x_ref, o_ref):
        x = x_ref[...].astype(jnp.bfloat16)            # (TM, F) bf16
        h = jnp.dot(x, w1, preferred_element_type=jnp.float32)
        h = jnp.maximum(h + b1, 0.0)                   # bias + ReLU in f32
        o = jnp.dot(h.astype(jnp.bfloat16), w2,        # cast AFTER bias/ReLU
                    preferred_element_type=jnp.float32)
        o_ref[...] = (o + b2).astype(o_ref.dtype)      # lane-dense (E=128) store

    branch(x1_ref, o1_ref)
    branch(x2_ref, o2_ref)


def _siamese_embed(x1_flat, x2_flat, w1, b1, w2, b2):
    """Run the SHARED embedding MLP on both [B, F] batches with one pallas_call.

    Two tiled inputs / two tiled outputs share the same constant-index weight
    BlockSpecs, so weights are DMA'd into VMEM exactly once and no wrapper-side
    concat / pad / slice passes over the activations are needed.
    """
    assert x1_flat.shape == x2_flat.shape, "siamese branches must share shape"
    M, F = x1_flat.shape
    H = w1.shape[1]
    E = w2.shape[1]

    TM = _pick_row_tile(M)
    grid = (pl.cdiv(M, TM),)   # partial edge tiles are masked by Pallas

    row_spec = pl.BlockSpec((TM, F), lambda i: (i, 0))     # tiled activations
    out_spec = pl.BlockSpec((TM, E), lambda i: (i, 0))     # tiled outputs

    out1, out2 = pl.pallas_call(
        _siamese_mlp_kernel,
        out_shape=(jax.ShapeDtypeStruct((M, E), jnp.float32),
                   jax.ShapeDtypeStruct((M, E), jnp.float32)),
        grid=grid,
        in_specs=[
            row_spec,                                   # x1 rows
            row_spec,                                   # x2 rows
            pl.BlockSpec((F, H), lambda i: (0, 0)),     # W1: resident (shared)
            pl.BlockSpec((1, H), lambda i: (0, 0)),     # b1 (f32)
            pl.BlockSpec((H, E), lambda i: (0, 0)),     # W2: resident (shared)
            pl.BlockSpec((1, E), lambda i: (0, 0)),     # b2 (f32)
        ],
        out_specs=(out_spec, out_spec),
        compiler_params=pltpu.CompilerParams(
            # Row tiles are independent -> v7x's two TCs can split the batch;
            # harmless on single-TC v5e/v6e.
            dimension_semantics=("parallel",),
            # Headroom for the larger row tiles (actual use ~9 MiB at TM=512,
            # F=1024); v5e's default scoped VMEM is only 16 MiB.
            vmem_limit_bytes=64 << 20,
        ),
    )(x1_flat, x2_flat, w1, b1, w2, b2)
    return out1, out2


def siamese_forward(params, *inputs):
    """Equivalent of SiameseNetwork.forward: applies the SHARED model to each
    of the two inputs and returns a list of two outputs."""
    assert len(inputs) == 2
    w1, b1, w2, b2 = params
    x1_flat = inputs[0].reshape(inputs[0].shape[0], -1)     # torch .view(B, -1)
    x2_flat = inputs[1].reshape(inputs[1].shape[0], -1)
    out1, out2 = _siamese_embed(x1_flat, x2_flat, w1, b1, w2, b2)
    return [out1, out2]


def init_params(key, in_features, hidden, embed_dim):
    """Deterministic parameter init (mimics nn.Linear default).

    Weights are stored in bf16 (halves weight HBM traffic, doubles MXU
    throughput on v6e/v7x); biases stay f32 for the f32 epilogue adds.
    """
    k1, k2, k3, k4 = jax.random.split(key, 4)
    lim1 = 1.0 / jnp.sqrt(in_features)
    lim2 = 1.0 / jnp.sqrt(hidden)
    w1 = jax.random.uniform(k1, (in_features, hidden), jnp.float32, -lim1, lim1)
    b1 = jax.random.uniform(k2, (1, hidden), jnp.float32, -lim1, lim1)
    w2 = jax.random.uniform(k3, (hidden, embed_dim), jnp.float32, -lim2, lim2)
    b2 = jax.random.uniform(k4, (1, embed_dim), jnp.float32, -lim2, lim2)
    return (w1.astype(jnp.bfloat16), b1, w2.astype(jnp.bfloat16), b2)


if __name__ == "__main__":
    key = jax.random.PRNGKey(0)
    kx1, kx2, kp = jax.random.split(key, 3)

    # Small NCHW inputs, consistent with a flatten+MLP embedding net.
    B, C, H, W = 2, 4, 16, 16
    hidden, embed_dim = 128, 128
    in_features = C * H * W  # 1024

    x1 = jax.random.normal(kx1, (B, C, H, W), jnp.float32)
    x2 = jax.random.normal(kx2, (B, C, H, W), jnp.float32)
    params = init_params(kp, in_features, hidden, embed_dim)

    out1, out2 = siamese_forward(params, x1, x2)
    jax.block_until_ready(out1)
    jax.block_until_ready(out2)

    # Pure-JAX reference of the same mixed-precision computation
    # (bf16 matmul inputs, f32 accumulation, f32 bias/ReLU) with shared weights.
    w1, b1, w2, b2 = params

    def ref(x):
        xf = x.reshape(x.shape[0], -1).astype(jnp.bfloat16)
        h = jnp.dot(xf, w1, preferred_element_type=jnp.float32) + b1
        h = jnp.maximum(h, 0.0)
        return jnp.dot(h.astype(jnp.bfloat16), w2,
                       preferred_element_type=jnp.float32) + b2

    assert out1.shape == (B, embed_dim) and out2.shape == (B, embed_dim)
    assert jnp.allclose(out1, ref(x1), atol=2e-3, rtol=2e-3)
    assert jnp.allclose(out2, ref(x2), atol=2e-3, rtol=2e-3)
    # Weight sharing sanity check: identical inputs -> identical embeddings.
    same = siamese_forward(params, x1, x1)
    assert jnp.array_equal(same[0], same[1])

    print("KERNEL_OK")
</pallas_src>

<mosaic_0001>
module attributes {stable_mosaic.version = 11 : i64} {
  func.func @_siamese_mlp_kernel(%arg0: i32, %arg1: memref<8x1024xf32, #tpu.memory_space<vmem>>, %arg2: memref<8x1024xf32, #tpu.memory_space<vmem>>, %arg3: memref<1024x128xbf16, #tpu.memory_space<vmem>>, %arg4: memref<1x128xf32, #tpu.memory_space<vmem>>, %arg5: memref<128x128xbf16, #tpu.memory_space<vmem>>, %arg6: memref<1x128xf32, #tpu.memory_space<vmem>>, %arg7: memref<8x128xf32, #tpu.memory_space<vmem>>, %arg8: memref<8x128xf32, #tpu.memory_space<vmem>>) attributes {dimension_semantics = [#tpu.dimension_semantics<parallel>], iteration_bounds = array<i64: 1>, scalar_prefetch = 0 : i64, scratch_operands = 0 : i64, tpu.core_type = #tpu.core_type<tc>, window_params = [{transform_indices = @transform_0, window_bounds = array<i64: 8, 1024>}, {transform_indices = @transform_1, window_bounds = array<i64: 8, 1024>}, {pipeline_mode = #tpu.pipeline_mode<synchronous>, transform_indices = @transform_2, window_bounds = array<i64: 1024, 128>}, {pipeline_mode = #tpu.pipeline_mode<synchronous>, transform_indices = @transform_3, window_bounds = array<i64: 1, 128>}, {pipeline_mode = #tpu.pipeline_mode<synchronous>, transform_indices = @transform_4, window_bounds = array<i64: 128, 128>}, {pipeline_mode = #tpu.pipeline_mode<synchronous>, transform_indices = @transform_5, window_bounds = array<i64: 1, 128>}, {transform_indices = @transform_6, window_bounds = array<i64: 8, 128>}, {transform_indices = @transform_7, window_bounds = array<i64: 8, 128>}]} {
    %c0 = arith.constant 0 : index
    %c0_0 = arith.constant 0 : index
    %0 = vector.load %arg3[%c0, %c0_0] : memref<1024x128xbf16, #tpu.memory_space<vmem>>, vector<1024x128xbf16>
    %c0_1 = arith.constant 0 : index
    %c0_2 = arith.constant 0 : index
    %1 = vector.load %arg4[%c0_1, %c0_2] : memref<1x128xf32, #tpu.memory_space<vmem>>, vector<1x128xf32>
    %c0_3 = arith.constant 0 : index
    %c0_4 = arith.constant 0 : index
    %2 = vector.load %arg5[%c0_3, %c0_4] : memref<128x128xbf16, #tpu.memory_space<vmem>>, vector<128x128xbf16>
    %c0_5 = arith.constant 0 : index
    %c0_6 = arith.constant 0 : index
    %3 = vector.load %arg6[%c0_5, %c0_6] : memref<1x128xf32, #tpu.memory_space<vmem>>, vector<1x128xf32>
    %c0_7 = arith.constant 0 : index
    %c0_8 = arith.constant 0 : index
    %4 = vector.load %arg1[%c0_7, %c0_8] : memref<8x1024xf32, #tpu.memory_space<vmem>>, vector<8x1024xf32>
    %5 = arith.truncf %4 : vector<8x1024xf32> to vector<8x1024xbf16>
    %cst = arith.constant dense<0.000000e+00> : vector<8x128xf32>
    %6 = tpu.matmul %5, %0, %cst {dimension_numbers = #tpu.dot_dimension_numbers<[1], [0], [0], [1], [0, 0, 1, 1], [], []>} : vector<8x1024xbf16>, vector<1024x128xbf16>, vector<8x128xf32> -> vector<8x128xf32>
    %7 = vector.broadcast %1 : vector<1x128xf32> to vector<8x128xf32>
    %8 = arith.addf %6, %7 : vector<8x128xf32>
    %cst_9 = arith.constant 0.000000e+00 : f32
    %9 = vector.broadcast %cst_9 : f32 to vector<8x128xf32>
    %10 = arith.maximumf %8, %9 : vector<8x128xf32>
    %11 = arith.truncf %10 : vector<8x128xf32> to vector<8x128xbf16>
    %cst_10 = arith.constant dense<0.000000e+00> : vector<8x128xf32>
    %12 = tpu.matmul %11, %2, %cst_10 {dimension_numbers = #tpu.dot_dimension_numbers<[1], [0], [0], [1], [0, 0, 1, 1], [], []>} : vector<8x128xbf16>, vector<128x128xbf16>, vector<8x128xf32> -> vector<8x128xf32>
    %13 = vector.broadcast %3 : vector<1x128xf32> to vector<8x128xf32>
    %14 = arith.addf %12, %13 : vector<8x128xf32>
    %c0_11 = arith.constant 0 : index
    %c0_12 = arith.constant 0 : index
    %15 = vector.load %arg7[%c0_11, %c0_12] : memref<8x128xf32, #tpu.memory_space<vmem>>, vector<8x128xf32>
    tpu.vector_store %arg7[%c0_11, %c0_12], %14 {strides = array<i32>} : memref<8x128xf32, #tpu.memory_space<vmem>>, vector<8x128xf32>,
    %c0_13 = arith.constant 0 : index
    %c0_14 = arith.constant 0 : index
    %16 = vector.load %arg2[%c0_13, %c0_14] : memref<8x1024xf32, #tpu.memory_space<vmem>>, vector<8x1024xf32>
    %17 = arith.truncf %16 : vector<8x1024xf32> to vector<8x1024xbf16>
    %cst_15 = arith.constant dense<0.000000e+00> : vector<8x128xf32>
    %18 = tpu.matmul %17, %0, %cst_15 {dimension_numbers = #tpu.dot_dimension_numbers<[1], [0], [0], [1], [0, 0, 1, 1], [], []>} : vector<8x1024xbf16>, vector<1024x128xbf16>, vector<8x128xf32> -> vector<8x128xf32>
    %19 = vector.broadcast %1 : vector<1x128xf32> to vector<8x128xf32>
    %20 = arith.addf %18, %19 : vector<8x128xf32>
    %cst_16 = arith.constant 0.000000e+00 : f32
    %21 = vector.broadcast %cst_16 : f32 to vector<8x128xf32>
    %22 = arith.maximumf %20, %21 : vector<8x128xf32>
    %23 = arith.truncf %22 : vector<8x128xf32> to vector<8x128xbf16>
    %cst_17 = arith.constant dense<0.000000e+00> : vector<8x128xf32>
    %24 = tpu.matmul %23, %2, %cst_17 {dimension_numbers = #tpu.dot_dimension_numbers<[1], [0], [0], [1], [0, 0, 1, 1], [], []>} : vector<8x128xbf16>, vector<128x128xbf16>, vector<8x128xf32> -> vector<8x128xf32>
    %25 = vector.broadcast %3 : vector<1x128xf32> to vector<8x128xf32>
    %26 = arith.addf %24, %25 : vector<8x128xf32>
    %c0_18 = arith.constant 0 : index
    %c0_19 = arith.constant 0 : index
    %27 = vector.load %arg8[%c0_18, %c0_19] : memref<8x128xf32, #tpu.memory_space<vmem>>, vector<8x128xf32>
    tpu.vector_store %arg8[%c0_18, %c0_19], %26 {strides = array<i32>} : memref<8x128xf32, #tpu.memory_space<vmem>>, vector<8x128xf32>,
    return
  }
  func.func @transform_0(%arg0: i32) -> (i32, i32) {
    %c0_i32 = arith.constant 0 : i32
    %c0_i32_0 = arith.constant 0 : i32
    return %arg0, %c0_i32 : i32, i32
  }
  func.func @transform_1(%arg0: i32) -> (i32, i32) {
    %c0_i32 = arith.constant 0 : i32
    %c0_i32_0 = arith.constant 0 : i32
    return %arg0, %c0_i32 : i32, i32
  }
  func.func @transform_2(%arg0: i32) -> (i32, i32) {
    %c0_i32 = arith.constant 0 : i32
    %c0_i32_0 = arith.constant 0 : i32
    %c0_i32_1 = arith.constant 0 : i32
    return %c0_i32, %c0_i32_0 : i32, i32
  }
  func.func @transform_3(%arg0: i32) -> (i32, i32) {
    %c0_i32 = arith.constant 0 : i32
    %c0_i32_0 = arith.constant 0 : i32
    %c0_i32_1 = arith.constant 0 : i32
    return %c0_i32, %c0_i32_0 : i32, i32
  }
  func.func @transform_4(%arg0: i32) -> (i32, i32) {
    %c0_i32 = arith.constant 0 : i32
    %c0_i32_0 = arith.constant 0 : i32
    %c0_i32_1 = arith.constant 0 : i32
    return %c0_i32, %c0_i32_0 : i32, i32
  }
  func.func @transform_5(%arg0: i32) -> (i32, i32) {
    %c0_i32 = arith.constant 0 : i32
    %c0_i32_0 = arith.constant 0 : i32
    %c0_i32_1 = arith.constant 0 : i32
    return %c0_i32, %c0_i32_0 : i32, i32
  }
  func.func @transform_6(%arg0: i32) -> (i32, i32) {
    %c0_i32 = arith.constant 0 : i32
    %c0_i32_0 = arith.constant 0 : i32
    return %arg0, %c0_i32 : i32, i32
  }
  func.func @transform_7(%arg0: i32) -> (i32, i32) {
    %c0_i32 = arith.constant 0 : i32
    %c0_i32_0 = arith.constant 0 : i32
    return %arg0, %c0_i32 : i32, i32
  }
}

</mosaic_0001>

<llo_original>
// kernel: tpu_custom_call.1
$region0: #{tpu_custom_call.1}
  #allocation0 [shape = 'u32[]', space=smem, size = 0x4, offset = 0x4, fixed_abs, tag = 'smem constant byte address 0x4 - core index']
  #allocation1 [shape = 'u32[144,128]{1,0:T(1,128)}', space=vmem, size = 0x12000, scoped, tag = 'internal scratch']
  %s0 = inlined_call_operand.hbm [shape: f32[2,1024], index: 0, kind: input, shape index: {}]
  %s1 = inlined_call_operand.hbm [shape: f32[2,1024], index: 1, kind: input, shape index: {}]
  %s2 = inlined_call_operand.hbm [shape: bf16[1024,128], index: 2, kind: input, shape index: {}]
  %s3 = inlined_call_operand.hbm [shape: f32[1,128], index: 3, kind: input, shape index: {}]
  %s4 = inlined_call_operand.hbm [shape: bf16[128,128], index: 4, kind: input, shape index: {}]
  %s5 = inlined_call_operand.hbm [shape: f32[1,128], index: 5, kind: input, shape index: {}]
  %s6 = inlined_call_operand.hbm [shape: f32[2,128], index: 6, kind: output, shape index: {0}]
  %s7 = inlined_call_operand.hbm [shape: f32[2,128], index: 7, kind: output, shape index: {1}]
  %8 = xla_tuple %s6, %s7
  %s9 = sld [smem:[#allocation0]]
  $region66: #{tpu_custom_call.1} parent=0
    _
  %s11 = ssub.s32 1, %s9
  %s12 = scalar_select 0, %s11, %s9
  $region1: #{tpu_custom_call.1} parent=0
    #allocation2 [shape = 'u8[32768]{0}', space=vmem, size = 0x8000, scoped, tag = 'input window, operand 0, single buffered']
    #allocation3 [shape = 's32[1]{0}', space=sflag, size = 0x4, scoped, tag = 'scoped memory for tpu_custom_call.1']
    #allocation4 [shape = 's32[1]{0}', space=sflag, size = 0x4, scoped, tag = 'scoped memory for tpu_custom_call.1']
    #allocation5 [shape = 'u8[32768]{0}', space=vmem, size = 0x8000, scoped, tag = 'input window, operand 1, single buffered']
    #allocation6 [shape = 's32[1]{0}', space=sflag, size = 0x4, scoped, tag = 'scoped memory for tpu_custom_call.1']
    #allocation7 [shape = 'u8[262144]{0}', space=vmem, size = 0x40000, scoped, tag = 'input window, operand 2, single buffered']
    #allocation8 [shape = 'u8[512]{0}', space=vmem, size = 0x400, scoped, tag = 'input window, operand 3, single buffered']
    #allocation9 [shape = 's32[1]{0}', space=sflag, size = 0x4, scoped, tag = 'scoped memory for tpu_custom_call.1']
    #allocation10 [shape = 'u8[32768]{0}', space=vmem, size = 0x8000, scoped, tag = 'input window, operand 4, single buffered']
    #allocation11 [shape = 'u8[512]{0}', space=vmem, size = 0x400, scoped, tag = 'input window, operand 5, single buffered']
    #allocation12 [shape = 's32[1]{0}', space=sflag, size = 0x4, scoped, tag = 'scoped memory for tpu_custom_call.1']
    #allocation13 [shape = 'u8[4096]{0}', space=vmem, size = 0x1000, scoped, tag = 'output window, operand 0, single buffered']
    #allocation14 [shape = 'u8[4096]{0}', space=vmem, size = 0x1000, scoped, tag = 'output window, operand 1, single buffered']
    #allocation15 [shape = 's32[1]{0}', space=sflag, size = 0x4, scoped, tag = 'scoped memory for tpu_custom_call.1']
    %13 = vsyncpa [#allocation3], 0
    %14 = vsyncpa [#allocation6], 0
    %15 = vsyncpa [#allocation9], 0
    %16 = vsyncpa [#allocation12], 0
    %17 = vsyncpa [#allocation4], 0
    %18 = vsyncpa [#allocation15], 0
    // Predicated region
    $region2: #{tpu_custom_call.1} parent=1 // pred_check
      _
    $region3: #{tpu_custom_call.1} parent=1 // pred_check_branch
      %20 = sbr.rel (0) target = $region5
    $region4: #{tpu_custom_call.1} parent=1 // pred_region
      %s22 = ssub.s32 1024, 256
      %23 = vsyncadd [#allocation3], %s22
      %s24 = sshll.u32 [#allocation2], 4
      %s25 = int_to_ptr.vmem [resolvable:$true] %s24
      %30 = dma.hbm_to_vmem [thread:$0]  %s0, 256, %s25, [#allocation3], 256, 256, 16
    $region5: #{tpu_custom_call.1} parent=1 // pred_fallthru
      _
    // Predicated region
    $region6: #{tpu_custom_call.1} parent=1 // pred_check
      _
    $region7: #{tpu_custom_call.1} parent=1 // pred_check_branch
      %32 = sbr.rel (0) target = $region9
    $region8: #{tpu_custom_call.1} parent=1 // pred_region
      %s34 = ssub.s32 1024, 256
      %35 = vsyncadd [#allocation6], %s34
      %s36 = sshll.u32 [#allocation5], 4
      %s37 = int_to_ptr.vmem [resolvable:$true] %s36
      %42 = dma.hbm_to_vmem [thread:$0]  %s1, 256, %s37, [#allocation6], 256, 256, 16
    $region9: #{tpu_custom_call.1} parent=1 // pred_fallthru
      _
    // Predicated region
    $region10: #{tpu_custom_call.1} parent=1 // pred_check
      _
    $region11: #{tpu_custom_call.1} parent=1 // pred_check_branch
      %44 = sbr.rel (0) target = $region13
    $region12: #{tpu_custom_call.1} parent=1 // pred_region
      %s46 = ssub.s32 8192, 8192
      %47 = vsyncadd [#allocation6], %s46
      %s48 = sshll.u32 [#allocation7], 4
      %s49 = int_to_ptr.vmem [resolvable:$true] %s48
      %54 = dma.hbm_to_vmem [thread:$0]  %s2, 8192, %s49, [#allocation6], 64, 64, 4
    $region13: #{tpu_custom_call.1} parent=1 // pred_fallthru
      _
    // Predicated region
    $region14: #{tpu_custom_call.1} parent=1 // pred_check
      _
    $region15: #{tpu_custom_call.1} parent=1 // pred_check_branch
      %56 = sbr.rel (0) target = $region17
    $region16: #{tpu_custom_call.1} parent=1 // pred_region
      %s58 = ssub.s32 16, 16
      %59 = vsyncadd [#allocation9], %s58
      %s61 = sshll.u32 [#allocation8], 4
      %s62 = int_to_ptr.vmem [resolvable:$true] %s61
      %64 = dma.hbm_to_vmem [thread:$0]  %s3, 16, %s62, [#allocation9]
    $region17: #{tpu_custom_call.1} parent=1 // pred_fallthru
      _
    // Predicated region
    $region18: #{tpu_custom_call.1} parent=1 // pred_check
      _
    $region19: #{tpu_custom_call.1} parent=1 // pred_check_branch
      %66 = sbr.rel (0) target = $region21
    $region20: #{tpu_custom_call.1} parent=1 // pred_region
      %s68 = ssub.s32 1024, 1024
      %69 = vsyncadd [#allocation9], %s68
      %s70 = sshll.u32 [#allocation10], 4
      %s71 = int_to_ptr.vmem [resolvable:$true] %s70
      %76 = dma.hbm_to_vmem [thread:$0]  %s4, 1024, %s71, [#allocation9], 64, 64, 4
    $region21: #{tpu_custom_call.1} parent=1 // pred_fallthru
      _
    // Predicated region
    $region22: #{tpu_custom_call.1} parent=1 // pred_check
      _
    $region23: #{tpu_custom_call.1} parent=1 // pred_check_branch
      %78 = sbr.rel (0) target = $region25
    $region24: #{tpu_custom_call.1} parent=1 // pred_region
      %s80 = ssub.s32 16, 16
      %81 = vsyncadd [#allocation12], %s80
      %s83 = sshll.u32 [#allocation11], 4
      %s84 = int_to_ptr.vmem [resolvable:$true] %s83
      %86 = dma.hbm_to_vmem [thread:$0]  %s5, 16, %s84, [#allocation12]
    $region25: #{tpu_custom_call.1} parent=1 // pred_fallthru
      _
    // Predicated region
    $region26: #{tpu_custom_call.1} parent=1 // pred_check
      _
    $region27: #{tpu_custom_call.1} parent=1 // pred_check_branch
      %88 = sbr.rel (0) target = $region29
    $region28: #{tpu_custom_call.1} parent=1 // pred_region
      %89 = dma.done [#allocation3], 1024
    $region29: #{tpu_custom_call.1} parent=1 // pred_fallthru
      _
    // Predicated region
    $region30: #{tpu_custom_call.1} parent=1 // pred_check
      _
    $region31: #{tpu_custom_call.1} parent=1 // pred_check_branch
      %91 = sbr.rel (0) target = $region33
    $region32: #{tpu_custom_call.1} parent=1 // pred_region
      %92 = dma.done [#allocation6], 1024
    $region33: #{tpu_custom_call.1} parent=1 // pred_fallthru
      _
    // Predicated region
    $region34: #{tpu_custom_call.1} parent=1 // pred_check
      _
    $region35: #{tpu_custom_call.1} parent=1 // pred_check_branch
      %94 = sbr.rel (0) target = $region37
    $region36: #{tpu_custom_call.1} parent=1 // pred_region
      %95 = dma.done [#allocation6], 8192
    $region37: #{tpu_custom_call.1} parent=1 // pred_fallthru
      _
    // Predicated region
    $region38: #{tpu_custom_call.1} parent=1 // pred_check
      _
    $region39: #{tpu_custom_call.1} parent=1 // pred_check_branch
      %97 = sbr.rel (0) target = $region41
    $region40: #{tpu_custom_call.1} parent=1 // pred_region
      %98 = dma.done [#allocation9], 16
    $region41: #{tpu_custom_call.1} parent=1 // pred_fallthru
      _
    // Predicated region
    $region42: #{tpu_custom_call.1} parent=1 // pred_check
      _
    $region43: #{tpu_custom_call.1} parent=1 // pred_check_branch
      %100 = sbr.rel (0) target = $region45
    $region44: #{tpu_custom_call.1} parent=1 // pred_region
      %101 = dma.done [#allocation9], 1024
    $region45: #{tpu_custom_call.1} parent=1 // pred_fallthru
      _
    // Predicated region
    $region46: #{tpu_custom_call.1} parent=1 // pred_check
      _
    $region47: #{tpu_custom_call.1} parent=1 // pred_check_branch
      %103 = sbr.rel (0) target = $region49
    $region48: #{tpu_custom_call.1} parent=1 // pred_region
      %104 = dma.done [#allocation12], 16
    $region49: #{tpu_custom_call.1} parent=1 // pred_fallthru
      _
    %v106 = vld [vmem:[#allocation7] sm:$0xf]
    %v107 = vld [vmem:[#allocation7 + $0x4] sm:$0xf]
    %v108 = vld [vmem:[#allocation7 + $0x8] sm:$0xf]
    %v109 = vld [vmem:[#allocation7 + $0xc] sm:$0xf]
    %v110 = vld [vmem:[#allocation7 + $0x10] sm:$0xf]
    %v111 = vld [vmem:[#allocation7 + $0x14] sm:$0xf]
    %v112 = vld [vmem:[#allocation7 + $0x18] sm:$0xf]
    %v113 = vld [vmem:[#allocation7 + $0x1c] sm:$0xf]
    %v114 = vld [vmem:[#allocation7 + $0x20] sm:$0xf]
    %v115 = vld [vmem:[#allocation7 + $0x24] sm:$0xf]
    %v116 = vld [vmem:[#allocation7 + $0x28] sm:$0xf]
    %v117 = vld [vmem:[#allocation7 + $0x2c] sm:$0xf]
    %v118 = vld [vmem:[#allocation7 + $0x30] sm:$0xf]
    %v119 = vld [vmem:[#allocation7 + $0x34] sm:$0xf]
    %v120 = vld [vmem:[#allocation7 + $0x38] sm:$0xf]
    %v121 = vld [vmem:[#allocation7 + $0x3c] sm:$0xf]
    %v122 = vld [vmem:[#allocation7 + $0x40] sm:$0xf]
    %v123 = vld [vmem:[#allocation7 + $0x44] sm:$0xf]
    %v124 = vld [vmem:[#allocation7 + $0x48] sm:$0xf]
    %v125 = vld [vmem:[#allocation7 + $0x4c] sm:$0xf]
    %v126 = vld [vmem:[#allocation7 + $0x50] sm:$0xf]
    %v127 = vld [vmem:[#allocation7 + $0x54] sm:$0xf]
    %v128 = vld [vmem:[#allocation7 + $0x58] sm:$0xf]
    %v129 = vld [vmem:[#allocation7 + $0x5c] sm:$0xf]
    %v130 = vld [vmem:[#allocation7 + $0x60] sm:$0xf]
    %v131 = vld [vmem:[#allocation7 + $0x64] sm:$0xf]
    %v132 = vld [vmem:[#allocation7 + $0x68] sm:$0xf]
    %v133 = vld [vmem:[#allocation7 + $0x6c] sm:$0xf]
    %v134 = vld [vmem:[#allocation7 + $0x70] sm:$0xf]
    %v135 = vld [vmem:[#allocation7 + $0x74] sm:$0xf]
    %v136 = vld [vmem:[#allocation7 + $0x78] sm:$0xf]
    %v137 = vld [vmem:[#allocation7 + $0x7c] sm:$0xf]
    %v138 = vld [vmem:[#allocation7 + $0x80] sm:$0xf]
    %v139 = vld [vmem:[#allocation7 + $0x84] sm:$0xf]
    %v140 = vld [vmem:[#allocation7 + $0x88] sm:$0xf]
    %v141 = vld [vmem:[#allocation7 + $0x8c] sm:$0xf]
    %v142 = vld [vmem:[#allocation7 + $0x90] sm:$0xf]
    %v143 = vld [vmem:[#allocation7 + $0x94] sm:$0xf]
    %v144 = vld [vmem:[#allocation7 + $0x98] sm:$0xf]
    %v145 = vld [vmem:[#allocation7 + $0x9c] sm:$0xf]
    %v146 = vld [vmem:[#allocation7 + $0xa0] sm:$0xf]
    %v147 = vld [vmem:[#allocation7 + $0xa4] sm:$0xf]
    %v148 = vld [vmem:[#allocation7 + $0xa8] sm:$0xf]
    %v149 = vld [vmem:[#allocation7 + $0xac] sm:$0xf]
    %v150 = vld [vmem:[#allocation7 + $0xb0] sm:$0xf]
    %v151 = vld [vmem:[#allocation7 + $0xb4] sm:$0xf]
    %v152 = vld [vmem:[#allocation7 + $0xb8] sm:$0xf]
    %v153 = vld [vmem:[#allocation7 + $0xbc] sm:$0xf]
    %v154 = vld [vmem:[#allocation7 + $0xc0] sm:$0xf]
    %v155 = vld [vmem:[#allocation7 + $0xc4] sm:$0xf]
    %v156 = vld [vmem:[#allocation7 + $0xc8] sm:$0xf]
    %v157 = vld [vmem:[#allocation7 + $0xcc] sm:$0xf]
    %v158 = vld [vmem:[#allocation7 + $0xd0] sm:$0xf]
    %v159 = vld [vmem:[#allocation7 + $0xd4] sm:$0xf]
    %v160 = vld [vmem:[#allocation7 + $0xd8] sm:$0xf]
    %v161 = vld [vmem:[#allocation7 + $0xdc] sm:$0xf]
    %v162 = vld [vmem:[#allocation7 + $0xe0] sm:$0xf]
    %v163 = vld [vmem:[#allocation7 + $0xe4] sm:$0xf]
    %v164 = vld [vmem:[#allocation7 + $0xe8] sm:$0xf]
    %v165 = vld [vmem:[#allocation7 + $0xec] sm:$0xf]
    %v166 = vld [vmem:[#allocation7 + $0xf0] sm:$0xf]
    %v167 = vld [vmem:[#allocation7 + $0xf4] sm:$0xf]
    %v168 = vld [vmem:[#allocation7 + $0xf8] sm:$0xf]
    %v169 = vld [vmem:[#allocation7 + $0xfc] sm:$0xf]
    %v170 = vld [vmem:[#allocation7 + $0x100] sm:$0xf]
    %v171 = vld [vmem:[#allocation7 + $0x104] sm:$0xf]
    %v172 = vld [vmem:[#allocation7 + $0x108] sm:$0xf]
    %v173 = vld [vmem:[#allocation7 + $0x10c] sm:$0xf]
    %v174 = vld [vmem:[#allocation7 + $0x110] sm:$0xf]
    %v175 = vld [vmem:[#allocation7 + $0x114] sm:$0xf]
    %v176 = vld [vmem:[#allocation7 + $0x118] sm:$0xf]
    %v177 = vld [vmem:[#allocation7 + $0x11c] sm:$0xf]
    %v178 = vld [vmem:[#allocation7 + $0x120] sm:$0xf]
    %v179 = vld [vmem:[#allocation7 + $0x124] sm:$0xf]
    %v180 = vld [vmem:[#allocation7 + $0x128] sm:$0xf]
    %v181 = vld [vmem:[#allocation7 + $0x12c] sm:$0xf]
    %v182 = vld [vmem:[#allocation7 + $0x130] sm:$0xf]
    %v183 = vld [vmem:[#allocation7 + $0x134] sm:$0xf]
    %v184 = vld [vmem:[#allocation7 + $0x138] sm:$0xf]
    %v185 = vld [vmem:[#allocation7 + $0x13c] sm:$0xf]
    %v186 = vld [vmem:[#allocation7 + $0x140] sm:$0xf]
    %v187 = vld [vmem:[#allocation7 + $0x144] sm:$0xf]
    %v188 = vld [vmem:[#allocation7 + $0x148] sm:$0xf]
    %v189 = vld [vmem:[#allocation7 + $0x14c] sm:$0xf]
    %v190 = vld [vmem:[#allocation7 + $0x150] sm:$0xf]
    %v191 = vld [vmem:[#allocation7 + $0x154] sm:$0xf]
    %v192 = vld [vmem:[#allocation7 + $0x158] sm:$0xf]
    %v193 = vld [vmem:[#allocation7 + $0x15c] sm:$0xf]
    %v194 = vld [vmem:[#allocation7 + $0x160] sm:$0xf]
    %v195 = vld [vmem:[#allocation7 + $0x164] sm:$0xf]
    %v196 = vld [vmem:[#allocation7 + $0x168] sm:$0xf]
    %v197 = vld [vmem:[#allocation7 + $0x16c] sm:$0xf]
    %v198 = vld [vmem:[#allocation7 + $0x170] sm:$0xf]
    %v199 = vld [vmem:[#allocation7 + $0x174] sm:$0xf]
    %v200 = vld [vmem:[#allocation7 + $0x178] sm:$0xf]
    %v201 = vld [vmem:[#allocation7 + $0x17c] sm:$0xf]
    %v202 = vld [vmem:[#allocation7 + $0x180] sm:$0xf]
    %v203 = vld [vmem:[#allocation7 + $0x184] sm:$0xf]
    %v204 = vld [vmem:[#allocation7 + $0x188] sm:$0xf]
    %v205 = vld [vmem:[#allocation7 + $0x18c] sm:$0xf]
    %v206 = vld [vmem:[#allocation7 + $0x190] sm:$0xf]
    %v207 = vld [vmem:[#allocation7 + $0x194] sm:$0xf]
    %v208 = vld [vmem:[#allocation7 + $0x198] sm:$0xf]
    %v209 = vld [vmem:[#allocation7 + $0x19c] sm:$0xf]
    %v210 = vld [vmem:[#allocation7 + $0x1a0] sm:$0xf]
    %v211 = vld [vmem:[#allocation7 + $0x1a4] sm:$0xf]
    %v212 = vld [vmem:[#allocation7 + $0x1a8] sm:$0xf]
    %v213 = vld [vmem:[#allocation7 + $0x1ac] sm:$0xf]
    %v214 = vld [vmem:[#allocation7 + $0x1b0] sm:$0xf]
    %v215 = vld [vmem:[#allocation7 + $0x1b4] sm:$0xf]
    %v216 = vld [vmem:[#allocation7 + $0x1b8] sm:$0xf]
    %v217 = vld [vmem:[#allocation7 + $0x1bc] sm:$0xf]
    %v218 = vld [vmem:[#allocation7 + $0x1c0] sm:$0xf]
    %v219 = vld [vmem:[#allocation7 + $0x1c4] sm:$0xf]
    %v220 = vld [vmem:[#allocation7 + $0x1c8] sm:$0xf]
    %v221 = vld [vmem:[#allocation7 + $0x1cc] sm:$0xf]
    %v222 = vld [vmem:[#allocation7 + $0x1d0] sm:$0xf]
    %v223 = vld [vmem:[#allocation7 + $0x1d4] sm:$0xf]
    %v224 = vld [vmem:[#allocation7 + $0x1d8] sm:$0xf]
    %v225 = vld [vmem:[#allocation7 + $0x1dc] sm:$0xf]
    %v226 = vld [vmem:[#allocation7 + $0x1e0] sm:$0xf]
    %v227 = vld [vmem:[#allocation7 + $0x1e4] sm:$0xf]
    %v228 = vld [vmem:[#allocation7 + $0x1e8] sm:$0xf]
    %v229 = vld [vmem:[#allocation7 + $0x1ec] sm:$0xf]
    %v230 = vld [vmem:[#allocation7 + $0x1f0] sm:$0xf]
    %v231 = vld [vmem:[#allocation7 + $0x1f4] sm:$0xf]
    %v232 = vld [vmem:[#allocation7 + $0x1f8] sm:$0xf]
    %v233 = vld [vmem:[#allocation7 + $0x1fc] sm:$0xf]
    %v234 = vld [vmem:[#allocation8] sm:$0x1]
    %v235 = vld [vmem:[#allocation10] sm:$0xf]
    %v236 = vld [vmem:[#allocation10 + $0x4] sm:$0xf]
    %v237 = vld [vmem:[#allocation10 + $0x8] sm:$0xf]
    %v238 = vld [vmem:[#allocation10 + $0xc] sm:$0xf]
    %v239 = vld [vmem:[#allocation10 + $0x10] sm:$0xf]
    %v240 = vld [vmem:[#allocation10 + $0x14] sm:$0xf]
    %v241 = vld [vmem:[#allocation10 + $0x18] sm:$0xf]
    %v242 = vld [vmem:[#allocation10 + $0x1c] sm:$0xf]
    %v243 = vld [vmem:[#allocation10 + $0x20] sm:$0xf]
    %v244 = vld [vmem:[#allocation10 + $0x24] sm:$0xf]
    %v245 = vld [vmem:[#allocation10 + $0x28] sm:$0xf]
    %v246 = vld [vmem:[#allocation10 + $0x2c] sm:$0xf]
    %v247 = vld [vmem:[#allocation10 + $0x30] sm:$0xf]
    %v248 = vld [vmem:[#allocation10 + $0x34] sm:$0xf]
    %v249 = vld [vmem:[#allocation10 + $0x38] sm:$0xf]
    %v250 = vld [vmem:[#allocation10 + $0x3c] sm:$0xf]
    %v251 = vld [vmem:[#allocation11] sm:$0x1]
    %v252 = vld [vmem:[#allocation2] sm:$0xff]
    %v253 = vld [vmem:[#allocation2 + $0x8] sm:$0xff]
    %v254 = vld [vmem:[#allocation2 + $0x10] sm:$0xff]
    %v255 = vld [vmem:[#allocation2 + $0x18] sm:$0xff]
    %v256 = vld [vmem:[#allocation2 + $0x20] sm:$0xff]
    %v257 = vld [vmem:[#allocation2 + $0x28] sm:$0xff]
    %v258 = vld [vmem:[#allocation2 + $0x30] sm:$0xff]
    %v259 = vld [vmem:[#allocation2 + $0x38] sm:$0xff]
    %v268 = vcombine.low %v252, %v254
    %v269 = vcombine.high %v252, %v254
    %v270 = vcombine.low %v256, %v258
    %v271 = vcombine.high %v256, %v258
    %v273 = vunpack.c.l.s4 1983009808
    %v274 = vunpack.c.0.s8 %v273
    %v275 = vlaneseq
    %v276 = vshrl.u32 %v275, 7
    %v277 = vsub.s32 %v274, %v276
    %v278 = vrot.slane %v268, %v277
    %v280 = vunpack.c.l.s4 1983009808
    %v281 = vunpack.c.0.s8 %v280
    %v282 = vlaneseq
    %v283 = vshrl.u32 %v282, 7
    %v284 = vsub.s32 %v281, %v283
    %v285 = vrot.slane %v269, %v284
    %v287 = vunpack.c.l.s4 1983009808
    %v288 = vunpack.c.0.s8 %v287
    %v289 = vlaneseq
    %v290 = vshrl.u32 %v289, 7
    %v291 = vsub.s32 %v288, %v290
    %v292 = vrot.slane %v270, %v291
    %v294 = vunpack.c.l.s4 1983009808
    %v295 = vunpack.c.0.s8 %v294
    %v296 = vlaneseq
    %v297 = vshrl.u32 %v296, 7
    %v298 = vsub.s32 %v295, %v297
    %v299 = vrot.slane %v271, %v298
    %v300 = vcombine.low %v278, %v292
    %v301 = vcombine.high %v278, %v292
    %v302 = vcombine.low %v285, %v299
    %v303 = vcombine.high %v285, %v299
    %v304 = vcombine.low %v253, %v255
    %v305 = vcombine.high %v253, %v255
    %v306 = vcombine.low %v257, %v259
    %v307 = vcombine.high %v257, %v259
    %v309 = vunpack.c.l.s4 1983009808
    %v310 = vunpack.c.0.s8 %v309
    %v311 = vlaneseq
    %v312 = vshrl.u32 %v311, 7
    %v313 = vsub.s32 %v310, %v312
    %v314 = vrot.slane %v304, %v313
    %v316 = vunpack.c.l.s4 1983009808
    %v317 = vunpack.c.0.s8 %v316
    %v318 = vlaneseq
    %v319 = vshrl.u32 %v318, 7
    %v320 = vsub.s32 %v317, %v319
    %v321 = vrot.slane %v305, %v320
    %v323 = vunpack.c.l.s4 1983009808
    %v324 = vunpack.c.0.s8 %v323
    %v325 = vlaneseq
    %v326 = vshrl.u32 %v325, 7
    %v327 = vsub.s32 %v324, %v326
    %v328 = vrot.slane %v306, %v327
    %v330 = vunpack.c.l.s4 1983009808
    %v331 = vunpack.c.0.s8 %v330
    %v332 = vlaneseq
    %v333 = vshrl.u32 %v332, 7
    %v334 = vsub.s32 %v331, %v333
    %v335 = vrot.slane %v307, %v334
    %v336 = vcombine.low %v314, %v328
    %v337 = vcombine.high %v314, %v328
    %v338 = vcombine.low %v321, %v335
    %v339 = vcombine.high %v321, %v335
    %v348 = vpack.c.bf16 %v300, %v300
    %v349 = vpack.c.bf16 %v301, %v301
    %v350 = vpack.c.bf16 %v302, %v302
    %v351 = vpack.c.bf16 %v303, %v303
    %v352 = vpack.c.bf16 %v336, %v336
    %v353 = vpack.c.bf16 %v337, %v337
    %v354 = vpack.c.bf16 %v338, %v338
    %v355 = vpack.c.bf16 %v339, %v339
    %v357 = vlaneseq
    %v358 = vshrl.u32 %v357, 7
    %v359 = vsub.s32 0, %v358
    %v360 = vrot.slane %v234, %v359
    %v490 = vunpack.c.l.b16 %v106
    %v491 = vunpack.c.l.b16 %v107
    %v492 = vunpack.c.l.b16 %v108
    %v493 = vunpack.c.l.b16 %v109
    %v494 = vunpack.c.l.b16 %v110
    %v495 = vunpack.c.l.b16 %v111
    %v496 = vunpack.c.l.b16 %v112
    %v497 = vunpack.c.l.b16 %v113
    %v498 = vunpack.c.l.b16 %v114
    %v499 = vunpack.c.l.b16 %v115
    %v500 = vunpack.c.l.b16 %v116
    %v501 = vunpack.c.l.b16 %v117
    %v502 = vunpack.c.l.b16 %v118
    %v503 = vunpack.c.l.b16 %v119
    %v504 = vunpack.c.l.b16 %v120
    %v505 = vunpack.c.l.b16 %v121
    %v506 = vunpack.c.l.b16 %v122
    %v507 = vunpack.c.l.b16 %v123
    %v508 = vunpack.c.l.b16 %v124
    %v509 = vunpack.c.l.b16 %v125
    %v510 = vunpack.c.l.b16 %v126
    %v511 = vunpack.c.l.b16 %v127
    %v512 = vunpack.c.l.b16 %v128
    %v513 = vunpack.c.l.b16 %v129
    %v514 = vunpack.c.l.b16 %v130
    %v515 = vunpack.c.l.b16 %v131
    %v516 = vunpack.c.l.b16 %v132
    %v517 = vunpack.c.l.b16 %v133
    %v518 = vunpack.c.l.b16 %v134
    %v519 = vunpack.c.l.b16 %v135
    %v520 = vunpack.c.l.b16 %v136
    %v521 = vunpack.c.l.b16 %v137
    %v522 = vunpack.c.l.b16 %v138
    %v523 = vunpack.c.l.b16 %v139
    %v524 = vunpack.c.l.b16 %v140
    %v525 = vunpack.c.l.b16 %v141
    %v526 = vunpack.c.l.b16 %v142
    %v527 = vunpack.c.l.b16 %v143
    %v528 = vunpack.c.l.b16 %v144
    %v529 = vunpack.c.l.b16 %v145
    %v530 = vunpack.c.l.b16 %v146
    %v531 = vunpack.c.l.b16 %v147
    %v532 = vunpack.c.l.b16 %v148
    %v533 = vunpack.c.l.b16 %v149
    %v534 = vunpack.c.l.b16 %v150
    %v535 = vunpack.c.l.b16 %v151
    %v536 = vunpack.c.l.b16 %v152
    %v537 = vunpack.c.l.b16 %v153
    %v538 = vunpack.c.l.b16 %v154
    %v539 = vunpack.c.l.b16 %v155
    %v540 = vunpack.c.l.b16 %v156
    %v541 = vunpack.c.l.b16 %v157
    %v542 = vunpack.c.l.b16 %v158
    %v543 = vunpack.c.l.b16 %v159
    %v544 = vunpack.c.l.b16 %v160
    %v545 = vunpack.c.l.b16 %v161
    %v546 = vunpack.c.l.b16 %v162
    %v547 = vunpack.c.l.b16 %v163
    %v548 = vunpack.c.l.b16 %v164
    %v549 = vunpack.c.l.b16 %v165
    %v550 = vunpack.c.l.b16 %v166
    %v551 = vunpack.c.l.b16 %v167
    %v552 = vunpack.c.l.b16 %v168
    %v553 = vunpack.c.l.b16 %v169
    %v554 = vunpack.c.l.b16 %v170
    %v555 = vunpack.c.l.b16 %v171
    %v556 = vunpack.c.l.b16 %v172
    %v557 = vunpack.c.l.b16 %v173
    %v558 = vunpack.c.l.b16 %v174
    %v559 = vunpack.c.l.b16 %v175
    %v560 = vunpack.c.l.b16 %v176
    %v561 = vunpack.c.l.b16 %v177
    %v562 = vunpack.c.l.b16 %v178
    %v563 = vunpack.c.l.b16 %v179
    %v564 = vunpack.c.l.b16 %v180
    %v565 = vunpack.c.l.b16 %v181
    %v566 = vunpack.c.l.b16 %v182
    %v567 = vunpack.c.l.b16 %v183
    %v568 = vunpack.c.l.b16 %v184
    %v569 = vunpack.c.l.b16 %v185
    %v570 = vunpack.c.l.b16 %v186
    %v571 = vunpack.c.l.b16 %v187
    %v572 = vunpack.c.l.b16 %v188
    %v573 = vunpack.c.l.b16 %v189
    %v574 = vunpack.c.l.b16 %v190
    %v575 = vunpack.c.l.b16 %v191
    %v576 = vunpack.c.l.b16 %v192
    %v577 = vunpack.c.l.b16 %v193
    %v578 = vunpack.c.l.b16 %v194
    %v579 = vunpack.c.l.b16 %v195
    %v580 = vunpack.c.l.b16 %v196
    %v581 = vunpack.c.l.b16 %v197
    %v582 = vunpack.c.l.b16 %v198
    %v583 = vunpack.c.l.b16 %v199
    %v584 = vunpack.c.l.b16 %v200
    %v585 = vunpack.c.l.b16 %v201
    %v586 = vunpack.c.l.b16 %v202
    %v587 = vunpack.c.l.b16 %v203
    %v588 = vunpack.c.l.b16 %v204
    %v589 = vunpack.c.l.b16 %v205
    %v590 = vunpack.c.l.b16 %v206
    %v591 = vunpack.c.l.b16 %v207
    %v592 = vunpack.c.l.b16 %v208
    %v593 = vunpack.c.l.b16 %v209
    %v594 = vunpack.c.l.b16 %v210
    %v595 = vunpack.c.l.b16 %v211
    %v596 = vunpack.c.l.b16 %v212
    %v597 = vunpack.c.l.b16 %v213
    %v598 = vunpack.c.l.b16 %v214
    %v599 = vunpack.c.l.b16 %v215
    %v600 = vunpack.c.l.b16 %v216
    %v601 = vunpack.c.l.b16 %v217
    %v602 = vunpack.c.l.b16 %v218
    %v603 = vunpack.c.l.b16 %v219
    %v604 = vunpack.c.l.b16 %v220
    %v605 = vunpack.c.l.b16 %v221
    %v606 = vunpack.c.l.b16 %v222
    %v607 = vunpack.c.l.b16 %v223
    %v608 = vunpack.c.l.b16 %v224
    %v609 = vunpack.c.l.b16 %v225
    %v610 = vunpack.c.l.b16 %v226
    %v611 = vunpack.c.l.b16 %v227
    %v612 = vunpack.c.l.b16 %v228
    %v613 = vunpack.c.l.b16 %v229
    %v614 = vunpack.c.l.b16 %v230
    %v615 = vunpack.c.l.b16 %v231
    %v616 = vunpack.c.l.b16 %v232
    %v617 = vunpack.c.l.b16 %v233
    %v618 = vpack.c.b16 %v491, %v490
    %v619 = vpack.c.b16 %v493, %v492
    %v620 = vpack.c.b16 %v495, %v494
    %v621 = vpack.c.b16 %v497, %v496
    %v622 = vpack.c.b16 %v499, %v498
    %v623 = vpack.c.b16 %v501, %v500
    %v624 = vpack.c.b16 %v503, %v502
    %v625 = vpack.c.b16 %v505, %v504
    %v626 = vpack.c.b16 %v507, %v506
    %v627 = vpack.c.b16 %v509, %v508
    %v628 = vpack.c.b16 %v511, %v510
    %v629 = vpack.c.b16 %v513, %v512
    %v630 = vpack.c.b16 %v515, %v514
    %v631 = vpack.c.b16 %v517, %v516
    %v632 = vpack.c.b16 %v519, %v518
    %v633 = vpack.c.b16 %v521, %v520
    %v634 = vpack.c.b16 %v523, %v522
    %v635 = vpack.c.b16 %v525, %v524
    %v636 = vpack.c.b16 %v527, %v526
    %v637 = vpack.c.b16 %v529, %v528
    %v638 = vpack.c.b16 %v531, %v530
    %v639 = vpack.c.b16 %v533, %v532
    %v640 = vpack.c.b16 %v535, %v534
    %v641 = vpack.c.b16 %v537, %v536
    %v642 = vpack.c.b16 %v539, %v538
    %v643 = vpack.c.b16 %v541, %v540
    %v644 = vpack.c.b16 %v543, %v542
    %v645 = vpack.c.b16 %v545, %v544
    %v646 = vpack.c.b16 %v547, %v546
    %v647 = vpack.c.b16 %v549, %v548
    %v648 = vpack.c.b16 %v551, %v550
    %v649 = vpack.c.b16 %v553, %v552
    %v650 = vpack.c.b16 %v555, %v554
    %v651 = vpack.c.b16 %v557, %v556
    %v652 = vpack.c.b16 %v559, %v558
    %v653 = vpack.c.b16 %v561, %v560
    %v654 = vpack.c.b16 %v563, %v562
    %v655 = vpack.c.b16 %v565, %v564
    %v656 = vpack.c.b16 %v567, %v566
    %v657 = vpack.c.b16 %v569, %v568
    %v658 = vpack.c.b16 %v571, %v570
    %v659 = vpack.c.b16 %v573, %v572
    %v660 = vpack.c.b16 %v575, %v574
    %v661 = vpack.c.b16 %v577, %v576
    %v662 = vpack.c.b16 %v579, %v578
    %v663 = vpack.c.b16 %v581, %v580
    %v664 = vpack.c.b16 %v583, %v582
    %v665 = vpack.c.b16 %v585, %v584
    %v666 = vpack.c.b16 %v587, %v586
    %v667 = vpack.c.b16 %v589, %v588
    %v668 = vpack.c.b16 %v591, %v590
    %v669 = vpack.c.b16 %v593, %v592
    %v670 = vpack.c.b16 %v595, %v594
    %v671 = vpack.c.b16 %v597, %v596
    %v672 = vpack.c.b16 %v599, %v598
    %v673 = vpack.c.b16 %v601, %v600
    %v674 = vpack.c.b16 %v603, %v602
    %v675 = vpack.c.b16 %v605, %v604
    %v676 = vpack.c.b16 %v607, %v606
    %v677 = vpack.c.b16 %v609, %v608
    %v678 = vpack.c.b16 %v611, %v610
    %v679 = vpack.c.b16 %v613, %v612
    %v680 = vpack.c.b16 %v615, %v614
    %v681 = vpack.c.b16 %v617, %v616
    %746 = vmatprep.subr.bf16.mxu0 0
    %747 = vmatpush1.bf16.msra.mxu0 %v618
    %748 = vmatprep.subr.bf16.mxu0 0
    %749 = vmatpush1.bf16.msra.mxu0 %v619
    %750 = vmatprep.subr.bf16.mxu0 0
    %751 = vmatpush1.bf16.msra.mxu0 %v620
    %752 = vmatprep.subr.bf16.mxu0 0
    %753 = vmatpush1.bf16.msra.mxu0 %v621
    %754 = vmatprep.subr.bf16.mxu0 0
    %755 = vmatpush1.bf16.msra.mxu0 %v622
    %756 = vmatprep.subr.bf16.mxu0 0
    %757 = vmatpush1.bf16.msra.mxu0 %v623
    %758 = vmatprep.subr.bf16.mxu0 0
    %759 = vmatpush1.bf16.msra.mxu0 %v624
    %760 = vmatprep.subr.bf16.mxu0 0
    %761 = vmatpush1.bf16.msra.mxu0 %v625
    %762 = vmatprep.subr.bf16.mxu0 0
    %763 = vmatpush1.bf16.msra.mxu0 %v626
    %764 = vmatprep.subr.bf16.mxu0 0
    %765 = vmatpush1.bf16.msra.mxu0 %v627
    %766 = vmatprep.subr.bf16.mxu0 0
    %767 = vmatpush1.bf16.msra.mxu0 %v628
    %768 = vmatprep.subr.bf16.mxu0 0
    %769 = vmatpush1.bf16.msra.mxu0 %v629
    %770 = vmatprep.subr.bf16.mxu0 0
    %771 = vmatpush1.bf16.msra.mxu0 %v630
    %772 = vmatprep.subr.bf16.mxu0 0
    %773 = vmatpush1.bf16.msra.mxu0 %v631
    %774 = vmatprep.subr.bf16.mxu0 0
    %775 = vmatpush1.bf16.msra.mxu0 %v632
    %776 = vmatprep.subr.bf16.mxu0 0
    %777 = vmatpush1.bf16.msra.mxu0 %v633
    %778 = vmatprep.mubr.bf16.mxu0 %v349
    %779 = vmatmul.mubr.bf16.gmra.mrb[0].mxu0 %v348
    %v780 = vpop.f32.mrb[0].mxu0
    %v781 = vadd.f32 %v360, %v780
    %v782 = vpop.f32.mrb[0].mxu0
    %v783 = vpop.f32.mrb[0].mxu0
    %v784 = vpop.f32.mrb[0].mxu0
    %785 = vdwg.mxu0
    %786 = vmatprep.subr.bf16.mxu0 0
    %787 = vmatpush1.bf16.msra.mxu0 %v634
    %788 = vmatprep.subr.bf16.mxu0 0
    %789 = vmatpush1.bf16.msra.mxu0 %v635
    %790 = vmatprep.subr.bf16.mxu0 0
    %791 = vmatpush1.bf16.msra.mxu0 %v636
    %792 = vmatprep.subr.bf16.mxu0 0
    %793 = vmatpush1.bf16.msra.mxu0 %v637
    %794 = vmatprep.subr.bf16.mxu0 0
    %795 = vmatpush1.bf16.msra.mxu0 %v638
    %796 = vmatprep.subr.bf16.mxu0 0
    %797 = vmatpush1.bf16.msra.mxu0 %v639
    %798 = vmatprep.subr.bf16.mxu0 0
    %799 = vmatpush1.bf16.msra.mxu0 %v640
    %800 = vmatprep.subr.bf16.mxu0 0
    %801 = vmatpush1.bf16.msra.mxu0 %v641
    %802 = vmatprep.subr.bf16.mxu0 0
    %803 = vmatpush1.bf16.msra.mxu0 %v642
    %804 = vmatprep.subr.bf16.mxu0 0
    %805 = vmatpush1.bf16.msra.mxu0 %v643
    %806 = vmatprep.subr.bf16.mxu0 0
    %807 = vmatpush1.bf16.msra.mxu0 %v644
    %808 = vmatprep.subr.bf16.mxu0 0
    %809 = vmatpush1.bf16.msra.mxu0 %v645
    %810 = vmatprep.subr.bf16.mxu0 0
    %811 = vmatpush1.bf16.msra.mxu0 %v646
    %812 = vmatprep.subr.bf16.mxu0 0
    %813 = vmatpush1.bf16.msra.mxu0 %v647
    %814 = vmatprep.subr.bf16.mxu0 0
    %815 = vmatpush1.bf16.msra.mxu0 %v648
    %816 = vmatprep.subr.bf16.mxu0 0
    %817 = vmatpush1.bf16.msra.mxu0 %v649
    %818 = vmatprep.mubr.bf16.mxu0 %v351
    %819 = vmatmul.mubr.bf16.gmra.mrb[0].mxu0 %v350
    %v820 = vpop.f32.mrb[0].mxu0
    %v821 = vadd.f32 %v781, %v820
    %v822 = vpop.f32.mrb[0].mxu0
    %v823 = vpop.f32.mrb[0].mxu0
    %v824 = vpop.f32.mrb[0].mxu0
    %825 = vdwg.mxu0
    %826 = vmatprep.subr.bf16.mxu0 0
    %827 = vmatpush1.bf16.msra.mxu0 %v650
    %828 = vmatprep.subr.bf16.mxu0 0
    %829 = vmatpush1.bf16.msra.mxu0 %v651
    %830 = vmatprep.subr.bf16.mxu0 0
    %831 = vmatpush1.bf16.msra.mxu0 %v652
    %832 = vmatprep.subr.bf16.mxu0 0
    %833 = vmatpush1.bf16.msra.mxu0 %v653
    %834 = vmatprep.subr.bf16.mxu0 0
    %835 = vmatpush1.bf16.msra.mxu0 %v654
    %836 = vmatprep.subr.bf16.mxu0 0
    %837 = vmatpush1.bf16.msra.mxu0 %v655
    %838 = vmatprep.subr.bf16.mxu0 0
    %839 = vmatpush1.bf16.msra.mxu0 %v656
    %840 = vmatprep.subr.bf16.mxu0 0
    %841 = vmatpush1.bf16.msra.mxu0 %v657
    %842 = vmatprep.subr.bf16.mxu0 0
    %843 = vmatpush1.bf16.msra.mxu0 %v658
    %844 = vmatprep.subr.bf16.mxu0 0
    %845 = vmatpush1.bf16.msra.mxu0 %v659
    %846 = vmatprep.subr.bf16.mxu0 0
    %847 = vmatpush1.bf16.msra.mxu0 %v660
    %848 = vmatprep.subr.bf16.mxu0 0
    %849 = vmatpush1.bf16.msra.mxu0 %v661
    %850 = vmatprep.subr.bf16.mxu0 0
    %851 = vmatpush1.bf16.msra.mxu0 %v662
    %852 = vmatprep.subr.bf16.mxu0 0
    %853 = vmatpush1.bf16.msra.mxu0 %v663
    %854 = vmatprep.subr.bf16.mxu0 0
    %855 = vmatpush1.bf16.msra.mxu0 %v664
    %856 = vmatprep.subr.bf16.mxu0 0
    %857 = vmatpush1.bf16.msra.mxu0 %v665
    %858 = vmatprep.mubr.bf16.mxu0 %v353
    %859 = vmatmul.mubr.bf16.gmra.mrb[0].mxu0 %v352
    %v860 = vpop.f32.mrb[0].mxu0
    %v861 = vadd.f32 %v821, %v860
    %v862 = vpop.f32.mrb[0].mxu0
    %v863 = vpop.f32.mrb[0].mxu0
    %v864 = vpop.f32.mrb[0].mxu0
    %865 = vdwg.mxu0
    %866 = vmatprep.subr.bf16.mxu0 0
    %867 = vmatpush1.bf16.msra.mxu0 %v666
    %868 = vmatprep.subr.bf16.mxu0 0
    %869 = vmatpush1.bf16.msra.mxu0 %v667
    %870 = vmatprep.subr.bf16.mxu0 0
    %871 = vmatpush1.bf16.msra.mxu0 %v668
    %872 = vmatprep.subr.bf16.mxu0 0
    %873 = vmatpush1.bf16.msra.mxu0 %v669
    %874 = vmatprep.subr.bf16.mxu0 0
    %875 = vmatpush1.bf16.msra.mxu0 %v670
    %876 = vmatprep.subr.bf16.mxu0 0
    %877 = vmatpush1.bf16.msra.mxu0 %v671
    %878 = vmatprep.subr.bf16.mxu0 0
    %879 = vmatpush1.bf16.msra.mxu0 %v672
    %880 = vmatprep.subr.bf16.mxu0 0
    %881 = vmatpush1.bf16.msra.mxu0 %v673
    %882 = vmatprep.subr.bf16.mxu0 0
    %883 = vmatpush1.bf16.msra.mxu0 %v674
    %884 = vmatprep.subr.bf16.mxu0 0
    %885 = vmatpush1.bf16.msra.mxu0 %v675
    %886 = vmatprep.subr.bf16.mxu0 0
    %887 = vmatpush1.bf16.msra.mxu0 %v676
    %888 = vmatprep.subr.bf16.mxu0 0
    %889 = vmatpush1.bf16.msra.mxu0 %v677
    %890 = vmatprep.subr.bf16.mxu0 0
    %891 = vmatpush1.bf16.msra.mxu0 %v678
    %892 = vmatprep.subr.bf16.mxu0 0
    %893 = vmatpush1.bf16.msra.mxu0 %v679
    %894 = vmatprep.subr.bf16.mxu0 0
    %895 = vmatpush1.bf16.msra.mxu0 %v680
    %896 = vmatprep.subr.bf16.mxu0 0
    %897 = vmatpush1.bf16.msra.mxu0 %v681
    %898 = vmatprep.mubr.bf16.mxu0 %v355
    %899 = vmatmul.mubr.bf16.gmra.mrb[0].mxu0 %v354
    %v900 = vpop.f32.mrb[0].mxu0
    %v901 = vadd.f32 %v861, %v900
    %v902 = vpop.f32.mrb[0].mxu0
    %v903 = vpop.f32.mrb[0].mxu0
    %v904 = vpop.f32.mrb[0].mxu0
    %905 = vdwg.mxu0
    %v906 = vmax.f32 %v901, 0.0
    %v907 = vpack.c.bf16 %v906, %v906
    %v909 = vlaneseq
    %v910 = vshrl.u32 %v909, 7
    %v911 = vsub.s32 0, %v910
    %v912 = vrot.slane %v251, %v911
    %v930 = vunpack.c.l.b16 %v235
    %v931 = vunpack.c.l.b16 %v236
    %v932 = vunpack.c.l.b16 %v237
    %v933 = vunpack.c.l.b16 %v238
    %v934 = vunpack.c.l.b16 %v239
    %v935 = vunpack.c.l.b16 %v240
    %v936 = vunpack.c.l.b16 %v241
    %v937 = vunpack.c.l.b16 %v242
    %v938 = vunpack.c.l.b16 %v243
    %v939 = vunpack.c.l.b16 %v244
    %v940 = vunpack.c.l.b16 %v245
    %v941 = vunpack.c.l.b16 %v246
    %v942 = vunpack.c.l.b16 %v247
    %v943 = vunpack.c.l.b16 %v248
    %v944 = vunpack.c.l.b16 %v249
    %v945 = vunpack.c.l.b16 %v250
    %v946 = vpack.c.b16 %v931, %v930
    %v947 = vpack.c.b16 %v933, %v932
    %v948 = vpack.c.b16 %v935, %v934
    %v949 = vpack.c.b16 %v937, %v936
    %v950 = vpack.c.b16 %v939, %v938
    %v951 = vpack.c.b16 %v941, %v940
    %v952 = vpack.c.b16 %v943, %v942
    %v953 = vpack.c.b16 %v945, %v944
    %962 = vmatprep.subr.bf16.mxu0 0
    %963 = vmatpush1.bf16.msra.mxu0 %v946
    %964 = vmatprep.subr.bf16.mxu0 0
    %965 = vmatpush1.bf16.msra.mxu0 %v947
    %966 = vmatprep.subr.bf16.mxu0 0
    %967 = vmatpush1.bf16.msra.mxu0 %v948
    %968 = vmatprep.subr.bf16.mxu0 0
    %969 = vmatpush1.bf16.msra.mxu0 %v949
    %970 = vmatprep.subr.bf16.mxu0 0
    %971 = vmatpush1.bf16.msra.mxu0 %v950
    %972 = vmatprep.subr.bf16.mxu0 0
    %973 = vmatpush1.bf16.msra.mxu0 %v951
    %974 = vmatprep.subr.bf16.mxu0 0
    %975 = vmatpush1.bf16.msra.mxu0 %v952
    %976 = vmatprep.subr.bf16.mxu0 0
    %977 = vmatpush1.bf16.msra.mxu0 %v953
    %978 = vmatprep.subr.bf16.mxu0 0
    %979 = vmatpush1.bf16.msra.mxu0 0
    %980 = vmatprep.subr.bf16.mxu0 0
    %981 = vmatpush1.bf16.msra.mxu0 0
    %982 = vmatprep.subr.bf16.mxu0 0
    %983 = vmatpush1.bf16.msra.mxu0 0
    %984 = vmatprep.subr.bf16.mxu0 0
    %985 = vmatpush1.bf16.msra.mxu0 0
    %986 = vmatprep.subr.bf16.mxu0 0
    %987 = vmatpush1.bf16.msra.mxu0 0
    %988 = vmatprep.subr.bf16.mxu0 0
    %989 = vmatpush1.bf16.msra.mxu0 0
    %990 = vmatprep.subr.bf16.mxu0 0
    %991 = vmatpush1.bf16.msra.mxu0 0
    %992 = vmatprep.subr.bf16.mxu0 0
    %993 = vmatpush1.bf16.msra.mxu0 0
    %994 = vmatprep.mubr.bf16.mxu0 0
    %995 = vmatmul.mubr.bf16.gmra.mrb[0].mxu0 %v907
    %v996 = vpop.f32.mrb[0].mxu0
    %v997 = vadd.f32 %v912, %v996
    %v998 = vpop.f32.mrb[0].mxu0
    %v999 = vpop.f32.mrb[0].mxu0
    %v1000 = vpop.f32.mrb[0].mxu0
    %1001 = vdwg.mxu0
    %1002 = vst [vmem:[#allocation13] sm:$0xff] %v997
    %v1003 = vld [vmem:[#allocation5] sm:$0xff]
    %v1004 = vld [vmem:[#allocation5 + $0x8] sm:$0xff]
    %v1005 = vld [vmem:[#allocation5 + $0x10] sm:$0xff]
    %v1006 = vld [vmem:[#allocation5 + $0x18] sm:$0xff]
    %v1007 = vld [vmem:[#allocation5 + $0x20] sm:$0xff]
    %v1008 = vld [vmem:[#allocation5 + $0x28] sm:$0xff]
    %v1009 = vld [vmem:[#allocation5 + $0x30] sm:$0xff]
    %v1010 = vld [vmem:[#allocation5 + $0x38] sm:$0xff]
    %v1019 = vcombine.low %v1003, %v1005
    %v1020 = vcombine.high %v1003, %v1005
    %v1021 = vcombine.low %v1007, %v1009
    %v1022 = vcombine.high %v1007, %v1009
    %v1024 = vunpack.c.l.s4 1983009808
    %v1025 = vunpack.c.0.s8 %v1024
    %v1026 = vlaneseq
    %v1027 = vshrl.u32 %v1026, 7
    %v1028 = vsub.s32 %v1025, %v1027
    %v1029 = vrot.slane %v1019, %v1028
    %v1031 = vunpack.c.l.s4 1983009808
    %v1032 = vunpack.c.0.s8 %v1031
    %v1033 = vlaneseq
    %v1034 = vshrl.u32 %v1033, 7
    %v1035 = vsub.s32 %v1032, %v1034
    %v1036 = vrot.slane %v1020, %v1035
    %v1038 = vunpack.c.l.s4 1983009808
    %v1039 = vunpack.c.0.s8 %v1038
    %v1040 = vlaneseq
    %v1041 = vshrl.u32 %v1040, 7
    %v1042 = vsub.s32 %v1039, %v1041
    %v1043 = vrot.slane %v1021, %v1042
    %v1045 = vunpack.c.l.s4 1983009808
    %v1046 = vunpack.c.0.s8 %v1045
    %v1047 = vlaneseq
    %v1048 = vshrl.u32 %v1047, 7
    %v1049 = vsub.s32 %v1046, %v1048
    %v1050 = vrot.slane %v1022, %v1049
    %v1051 = vcombine.low %v1029, %v1043
    %v1052 = vcombine.high %v1029, %v1043
    %v1053 = vcombine.low %v1036, %v1050
    %v1054 = vcombine.high %v1036, %v1050
    %v1055 = vcombine.low %v1004, %v1006
    %v1056 = vcombine.high %v1004, %v1006
    %v1057 = vcombine.low %v1008, %v1010
    %v1058 = vcombine.high %v1008, %v1010
    %v1060 = vunpack.c.l.s4 1983009808
    %v1061 = vunpack.c.0.s8 %v1060
    %v1062 = vlaneseq
    %v1063 = vshrl.u32 %v1062, 7
    %v1064 = vsub.s32 %v1061, %v1063
    %v1065 = vrot.slane %v1055, %v1064
    %v1067 = vunpack.c.l.s4 1983009808
    %v1068 = vunpack.c.0.s8 %v1067
    %v1069 = vlaneseq
    %v1070 = vshrl.u32 %v1069, 7
    %v1071 = vsub.s32 %v1068, %v1070
    %v1072 = vrot.slane %v1056, %v1071
    %v1074 = vunpack.c.l.s4 1983009808
    %v1075 = vunpack.c.0.s8 %v1074
    %v1076 = vlaneseq
    %v1077 = vshrl.u32 %v1076, 7
    %v1078 = vsub.s32 %v1075, %v1077
    %v1079 = vrot.slane %v1057, %v1078
    %v1081 = vunpack.c.l.s4 1983009808
    %v1082 = vunpack.c.0.s8 %v1081
    %v1083 = vlaneseq
    %v1084 = vshrl.u32 %v1083, 7
    %v1085 = vsub.s32 %v1082, %v1084
    %v1086 = vrot.slane %v1058, %v1085
    %v1087 = vcombine.low %v1065, %v1079
    %v1088 = vcombine.high %v1065, %v1079
    %v1089 = vcombine.low %v1072, %v1086
    %v1090 = vcombine.high %v1072, %v1086
    %v1099 = vpack.c.bf16 %v1051, %v1051
    %v1100 = vpack.c.bf16 %v1052, %v1052
    %v1101 = vpack.c.bf16 %v1053, %v1053
    %v1102 = vpack.c.bf16 %v1054, %v1054
    %v1103 = vpack.c.bf16 %v1087, %v1087
    %v1104 = vpack.c.bf16 %v1088, %v1088
    %v1105 = vpack.c.bf16 %v1089, %v1089
    %v1106 = vpack.c.bf16 %v1090, %v1090
    %1107 = vmatprep.subr.bf16.mxu0 0
    %1108 = vmatpush1.bf16.msra.mxu0 %v618
    %1109 = vmatprep.subr.bf16.mxu0 0
    %1110 = vmatpush1.bf16.msra.mxu0 %v619
    %1111 = vmatprep.subr.bf16.mxu0 0
    %1112 = vmatpush1.bf16.msra.mxu0 %v620
    %1113 = vmatprep.subr.bf16.mxu0 0
    %1114 = vmatpush1.bf16.msra.mxu0 %v621
    %1115 = vmatprep.subr.bf16.mxu0 0
    %1116 = vmatpush1.bf16.msra.mxu0 %v622
    %1117 = vmatprep.subr.bf16.mxu0 0
    %1118 = vmatpush1.bf16.msra.mxu0 %v623
    %1119 = vmatprep.subr.bf16.mxu0 0
    %1120 = vmatpush1.bf16.msra.mxu0 %v624
    %1121 = vmatprep.subr.bf16.mxu0 0
    %1122 = vmatpush1.bf16.msra.mxu0 %v625
    %1123 = vmatprep.subr.bf16.mxu0 0
    %1124 = vmatpush1.bf16.msra.mxu0 %v626
    %1125 = vmatprep.subr.bf16.mxu0 0
    %1126 = vmatpush1.bf16.msra.mxu0 %v627
    %1127 = vmatprep.subr.bf16.mxu0 0
    %1128 = vmatpush1.bf16.msra.mxu0 %v628
    %1129 = vmatprep.subr.bf16.mxu0 0
    %1130 = vmatpush1.bf16.msra.mxu0 %v629
    %1131 = vmatprep.subr.bf16.mxu0 0
    %1132 = vmatpush1.bf16.msra.mxu0 %v630
    %1133 = vmatprep.subr.bf16.mxu0 0
    %1134 = vmatpush1.bf16.msra.mxu0 %v631
    %1135 = vmatprep.subr.bf16.mxu0 0
    %1136 = vmatpush1.bf16.msra.mxu0 %v632
    %1137 = vmatprep.subr.bf16.mxu0 0
    %1138 = vmatpush1.bf16.msra.mxu0 %v633
    %1139 = vmatprep.mubr.bf16.mxu0 %v1100
    %1140 = vmatmul.mubr.bf16.gmra.mrb[0].mxu0 %v1099
    %v1141 = vpop.f32.mrb[0].mxu0
    %v1142 = vadd.f32 %v360, %v1141
    %v1143 = vpop.f32.mrb[0].mxu0
    %v1144 = vpop.f32.mrb[0].mxu0
    %v1145 = vpop.f32.mrb[0].mxu0
    %1146 = vdwg.mxu0
    %1147 = vmatprep.subr.bf16.mxu0 0
    %1148 = vmatpush1.bf16.msra.mxu0 %v634
    %1149 = vmatprep.subr.bf16.mxu0 0
    %1150 = vmatpush1.bf16.msra.mxu0 %v635
    %1151 = vmatprep.subr.bf16.mxu0 0
    %1152 = vmatpush1.bf16.msra.mxu0 %v636
    %1153 = vmatprep.subr.bf16.mxu0 0
    %1154 = vmatpush1.bf16.msra.mxu0 %v637
    %1155 = vmatprep.subr.bf16.mxu0 0
    %1156 = vmatpush1.bf16.msra.mxu0 %v638
    %1157 = vmatprep.subr.bf16.mxu0 0
    %1158 = vmatpush1.bf16.msra.mxu0 %v639
    %1159 = vmatprep.subr.bf16.mxu0 0
    %1160 = vmatpush1.bf16.msra.mxu0 %v640
    %1161 = vmatprep.subr.bf16.mxu0 0
    %1162 = vmatpush1.bf16.msra.mxu0 %v641
    %1163 = vmatprep.subr.bf16.mxu0 0
    %1164 = vmatpush1.bf16.msra.mxu0 %v642
    %1165 = vmatprep.subr.bf16.mxu0 0
    %1166 = vmatpush1.bf16.msra.mxu0 %v643
    %1167 = vmatprep.subr.bf16.mxu0 0
    %1168 = vmatpush1.bf16.msra.mxu0 %v644
    %1169 = vmatprep.subr.bf16.mxu0 0
    %1170 = vmatpush1.bf16.msra.mxu0 %v645
    %1171 = vmatprep.subr.bf16.mxu0 0
    %1172 = vmatpush1.bf16.msra.mxu0 %v646
    %1173 = vmatprep.subr.bf16.mxu0 0
    %1174 = vmatpush1.bf16.msra.mxu0 %v647
    %1175 = vmatprep.subr.bf16.mxu0 0
    %1176 = vmatpush1.bf16.msra.mxu0 %v648
    %1177 = vmatprep.subr.bf16.mxu0 0
    %1178 = vmatpush1.bf16.msra.mxu0 %v649
    %1179 = vmatprep.mubr.bf16.mxu0 %v1102
    %1180 = vmatmul.mubr.bf16.gmra.mrb[0].mxu0 %v1101
    %v1181 = vpop.f32.mrb[0].mxu0
    %v1182 = vadd.f32 %v1142, %v1181
    %v1183 = vpop.f32.mrb[0].mxu0
    %v1184 = vpop.f32.mrb[0].mxu0
    %v1185 = vpop.f32.mrb[0].mxu0
    %1186 = vdwg.mxu0
    %1187 = vmatprep.subr.bf16.mxu0 0
    %1188 = vmatpush1.bf16.msra.mxu0 %v650
    %1189 = vmatprep.subr.bf16.mxu0 0
    %1190 = vmatpush1.bf16.msra.mxu0 %v651
    %1191 = vmatprep.subr.bf16.mxu0 0
    %1192 = vmatpush1.bf16.msra.mxu0 %v652
    %1193 = vmatprep.subr.bf16.mxu0 0
    %1194 = vmatpush1.bf16.msra.mxu0 %v653
    %1195 = vmatprep.subr.bf16.mxu0 0
    %1196 = vmatpush1.bf16.msra.mxu0 %v654
    %1197 = vmatprep.subr.bf16.mxu0 0
    %1198 = vmatpush1.bf16.msra.mxu0 %v655
    %1199 = vmatprep.subr.bf16.mxu0 0
    %1200 = vmatpush1.bf16.msra.mxu0 %v656
    %1201 = vmatprep.subr.bf16.mxu0 0
    %1202 = vmatpush1.bf16.msra.mxu0 %v657
    %1203 = vmatprep.subr.bf16.mxu0 0
    %1204 = vmatpush1.bf16.msra.mxu0 %v658
    %1205 = vmatprep.subr.bf16.mxu0 0
    %1206 = vmatpush1.bf16.msra.mxu0 %v659
    %1207 = vmatprep.subr.bf16.mxu0 0
    %1208 = vmatpush1.bf16.msra.mxu0 %v660
    %1209 = vmatprep.subr.bf16.mxu0 0
    %1210 = vmatpush1.bf16.msra.mxu0 %v661
    %1211 = vmatprep.subr.bf16.mxu0 0
    %1212 = vmatpush1.bf16.msra.mxu0 %v662
    %1213 = vmatprep.subr.bf16.mxu0 0
    %1214 = vmatpush1.bf16.msra.mxu0 %v663
    %1215 = vmatprep.subr.bf16.mxu0 0
    %1216 = vmatpush1.bf16.msra.mxu0 %v664
    %1217 = vmatprep.subr.bf16.mxu0 0
    %1218 = vmatpush1.bf16.msra.mxu0 %v665
    %1219 = vmatprep.mubr.bf16.mxu0 %v1104
    %1220 = vmatmul.mubr.bf16.gmra.mrb[0].mxu0 %v1103
    %v1221 = vpop.f32.mrb[0].mxu0
    %v1222 = vadd.f32 %v1182, %v1221
    %v1223 = vpop.f32.mrb[0].mxu0
    %v1224 = vpop.f32.mrb[0].mxu0
    %v1225 = vpop.f32.mrb[0].mxu0
    %1226 = vdwg.mxu0
    %1227 = vmatprep.subr.bf16.mxu0 0
    %1228 = vmatpush1.bf16.msra.mxu0 %v666
    %1229 = vmatprep.subr.bf16.mxu0 0
    %1230 = vmatpush1.bf16.msra.mxu0 %v667
    %1231 = vmatprep.subr.bf16.mxu0 0
    %1232 = vmatpush1.bf16.msra.mxu0 %v668
    %1233 = vmatprep.subr.bf16.mxu0 0
    %1234 = vmatpush1.bf16.msra.mxu0 %v669
    %1235 = vmatprep.subr.bf16.mxu0 0
    %1236 = vmatpush1.bf16.msra.mxu0 %v670
    %1237 = vmatprep.subr.bf16.mxu0 0
    %1238 = vmatpush1.bf16.msra.mxu0 %v671
    %1239 = vmatprep.subr.bf16.mxu0 0
    %1240 = vmatpush1.bf16.msra.mxu0 %v672
    %1241 = vmatprep.subr.bf16.mxu0 0
    %1242 = vmatpush1.bf16.msra.mxu0 %v673
    %1243 = vmatprep.subr.bf16.mxu0 0
    %1244 = vmatpush1.bf16.msra.mxu0 %v674
    %1245 = vmatprep.subr.bf16.mxu0 0
    %1246 = vmatpush1.bf16.msra.mxu0 %v675
    %1247 = vmatprep.subr.bf16.mxu0 0
    %1248 = vmatpush1.bf16.msra.mxu0 %v676
    %1249 = vmatprep.subr.bf16.mxu0 0
    %1250 = vmatpush1.bf16.msra.mxu0 %v677
    %1251 = vmatprep.subr.bf16.mxu0 0
    %1252 = vmatpush1.bf16.msra.mxu0 %v678
    %1253 = vmatprep.subr.bf16.mxu0 0
    %1254 = vmatpush1.bf16.msra.mxu0 %v679
    %1255 = vmatprep.subr.bf16.mxu0 0
    %1256 = vmatpush1.bf16.msra.mxu0 %v680
    %1257 = vmatprep.subr.bf16.mxu0 0
    %1258 = vmatpush1.bf16.msra.mxu0 %v681
    %1259 = vmatprep.mubr.bf16.mxu0 %v1106
    %1260 = vmatmul.mubr.bf16.gmra.mrb[0].mxu0 %v1105
    %v1261 = vpop.f32.mrb[0].mxu0
    %v1262 = vadd.f32 %v1222, %v1261
    %v1263 = vpop.f32.mrb[0].mxu0
    %v1264 = vpop.f32.mrb[0].mxu0
    %v1265 = vpop.f32.mrb[0].mxu0
    %1266 = vdwg.mxu0
    %v1267 = vmax.f32 %v1262, 0.0
    %v1268 = vpack.c.bf16 %v1267, %v1267
    %1269 = vmatprep.subr.bf16.mxu0 0
    %1270 = vmatpush1.bf16.msra.mxu0 %v946
    %1271 = vmatprep.subr.bf16.mxu0 0
    %1272 = vmatpush1.bf16.msra.mxu0 %v947
    %1273 = vmatprep.subr.bf16.mxu0 0
    %1274 = vmatpush1.bf16.msra.mxu0 %v948
    %1275 = vmatprep.subr.bf16.mxu0 0
    %1276 = vmatpush1.bf16.msra.mxu0 %v949
    %1277 = vmatprep.subr.bf16.mxu0 0
    %1278 = vmatpush1.bf16.msra.mxu0 %v950
    %1279 = vmatprep.subr.bf16.mxu0 0
    %1280 = vmatpush1.bf16.msra.mxu0 %v951
    %1281 = vmatprep.subr.bf16.mxu0 0
    %1282 = vmatpush1.bf16.msra.mxu0 %v952
    %1283 = vmatprep.subr.bf16.mxu0 0
    %1284 = vmatpush1.bf16.msra.mxu0 %v953
    %1285 = vmatprep.subr.bf16.mxu0 0
    %1286 = vmatpush1.bf16.msra.mxu0 0
    %1287 = vmatprep.subr.bf16.mxu0 0
    %1288 = vmatpush1.bf16.msra.mxu0 0
    %1289 = vmatprep.subr.bf16.mxu0 0
    %1290 = vmatpush1.bf16.msra.mxu0 0
    %1291 = vmatprep.subr.bf16.mxu0 0
    %1292 = vmatpush1.bf16.msra.mxu0 0
    %1293 = vmatprep.subr.bf16.mxu0 0
    %1294 = vmatpush1.bf16.msra.mxu0 0
    %1295 = vmatprep.subr.bf16.mxu0 0
    %1296 = vmatpush1.bf16.msra.mxu0 0
    %1297 = vmatprep.subr.bf16.mxu0 0
    %1298 = vmatpush1.bf16.msra.mxu0 0
    %1299 = vmatprep.subr.bf16.mxu0 0
    %1300 = vmatpush1.bf16.msra.mxu0 0
    %1301 = vmatprep.mubr.bf16.mxu0 0
    %1302 = vmatmul.mubr.bf16.gmra.mrb[0].mxu0 %v1268
    %v1303 = vpop.f32.mrb[0].mxu0
    %v1304 = vadd.f32 %v912, %v1303
    %v1305 = vpop.f32.mrb[0].mxu0
    %v1306 = vpop.f32.mrb[0].mxu0
    %v1307 = vpop.f32.mrb[0].mxu0
    %1308 = vdwg.mxu0
    %1309 = vst [vmem:[#allocation14] sm:$0xff] %v1304
    // Predicated region
    $region50: #{tpu_custom_call.1} parent=1 // pred_check
      _
    $region51: #{tpu_custom_call.1} parent=1 // pred_check_branch
      %1311 = sbr.rel (0) target = $region53
    $region52: #{tpu_custom_call.1} parent=1 // pred_region
      %s1313 = ssub.s32 128, 32
      %1314 = vsyncadd [#allocation4], %s1313
      %s1315 = sshll.u32 [#allocation13], 4
      %s1316 = int_to_ptr.vmem [resolvable:$true] %s1315
      %1321 = dma.vmem_to_hbm [thread:$0]  %s1316, 32, %s6, [#allocation4], 32, 32, 2
    $region53: #{tpu_custom_call.1} parent=1 // pred_fallthru
      _
    // Predicated region
    $region54: #{tpu_custom_call.1} parent=1 // pred_check
      _
    $region55: #{tpu_custom_call.1} parent=1 // pred_check_branch
      %1323 = sbr.rel (0) target = $region57
    $region56: #{tpu_custom_call.1} parent=1 // pred_region
      %s1325 = ssub.s32 128, 32
      %1326 = vsyncadd [#allocation15], %s1325
      %s1327 = sshll.u32 [#allocation14], 4
      %s1328 = int_to_ptr.vmem [resolvable:$true] %s1327
      %1333 = dma.vmem_to_hbm [thread:$0]  %s1328, 32, %s7, [#allocation15], 32, 32, 2
    $region57: #{tpu_custom_call.1} parent=1 // pred_fallthru
      _
    // Predicated region
    $region58: #{tpu_custom_call.1} parent=1 // pred_check
      _
    $region59: #{tpu_custom_call.1} parent=1 // pred_check_branch
      %1335 = sbr.rel (0) target = $region61
    $region60: #{tpu_custom_call.1} parent=1 // pred_region
      %1336 = dma.done [#allocation4], 128
    $region61: #{tpu_custom_call.1} parent=1 // pred_fallthru
      _
    // Predicated region
    $region62: #{tpu_custom_call.1} parent=1 // pred_check
      _
    $region63: #{tpu_custom_call.1} parent=1 // pred_check_branch
      %1338 = sbr.rel (0) target = $region65
    $region64: #{tpu_custom_call.1} parent=1 // pred_region
      %1339 = dma.done [#allocation15], 128
    $region65: #{tpu_custom_call.1} parent=1 // pred_fallthru
      _
    %1340 = vsyncpa [#allocation3], 1
    %1341 = vsyncpa [#allocation6], 1
    %1342 = vsyncpa [#allocation9], 1
    %1343 = vsyncpa [#allocation12], 1
    %1344 = vsyncpa [#allocation4], 1
    %1345 = vsyncpa [#allocation15], 1

</llo_original>
